<compile_context>
chip_gen: v7x
topology: tpu7x:2x2x1
jax: 0.10.0
libtpu: 0.0.40
codegen_flags: <defaults>
</compile_context>

<pallas_src>
import functools

import jax
import jax.numpy as jnp
from jax.experimental import pallas as pl
from jax.experimental.pallas import tpu as pltpu

# ---- small, deterministic model config ----
B = 2            # batch
IN_SIZE = 4      # input_size
SEQ = 8          # sequence length
HIDDEN = 32      # hidden_size
HEADS = 4        # num_heads
LAYERS = 2       # num_layers
OUT_SIZE = 3     # output_size
DK = HIDDEN // HEADS
LN_EPS = 1e-5    # nn.LayerNorm default
PE_MAX_LEN = 10000  # PositionalEncoding default max_len


# ----------------------------- positional-encoding table -----------------------------
def make_pe(max_len, hidden):
    # identical to the PyTorch buffer construction
    pos = jnp.arange(max_len, dtype=jnp.float32)[:, None]
    div = jnp.exp(jnp.arange(0, hidden, 2, dtype=jnp.float32) * (-jnp.log(10000.0) / hidden))
    pe = jnp.zeros((max_len, hidden), jnp.float32)
    pe = pe.at[:, 0::2].set(jnp.sin(pos * div))
    pe = pe.at[:, 1::2].set(jnp.cos(pos * div))
    return pe[None]          # (1, max_len, hidden), matches register_buffer('pe')


# ----------------------------- kernel 1: the spec module -----------------------------
def positional_encoding_kernel(x_ref, pe_ref, o_ref):
    # PositionalEncoding.forward: x = x + pe[:, :x.size(1)]; dropout = identity (eval).
    o_ref[...] = x_ref[...] + pe_ref[...]


def positional_encoding(x, pe_buf):
    b, t, h = x.shape
    # lane-dense presentation: last dim = t*h = 256 (multiple of 128) -> unmasked stores
    x2d = x.reshape(b, t * h)
    pe2d = pe_buf[0, :t].reshape(1, t * h)     # mirrors self.pe[:, :x.size(1)]
    out = pl.pallas_call(
        positional_encoding_kernel,
        out_shape=jax.ShapeDtypeStruct((b, t * h), x.dtype),
    )(x2d, pe2d)
    return out.reshape(b, t, h)


# ----------------------------- kernel 2: fused transformer forward -----------------------------
def fused_transformer_kernel(x_ref, w_in_ref, bias_pe_ref, w_a_ref, w2_ref,
                             vec_ref, wob_ref, o_ref,
                             *, batch, seq, hidden, heads, d_k, layers):
    bt = batch * seq
    scale = 1.0 / jnp.sqrt(jnp.float32(d_k))

    def layernorm(z, gamma, beta):
        mu = jnp.mean(z, axis=-1, keepdims=True)
        var = jnp.mean((z - mu) ** 2, axis=-1, keepdims=True)
        return (z - mu) * jax.lax.rsqrt(var + LN_EPS) * gamma + beta

    # input projection + PositionalEncoding.forward (bias_pe = b_in + pe; dropout = identity, eval)
    h = jnp.dot(x_ref[...], w_in_ref[...], preferred_element_type=jnp.float32)
    h = h + bias_pe_ref[...]                                          # (B*T, H)

    for l in range(layers):                       # static unroll over the 2 layers
        w_a = w_a_ref[l]                          # (hidden, 8*hidden): [Wq|Wk|Wv | Wo | W1]
        w2 = w2_ref[l]                            # (4*hidden, hidden)
        vec = vec_ref[l]                          # (1, 13*hidden)
        wqkv = w_a[:, 0 * hidden:3 * hidden]
        wo = w_a[:, 3 * hidden:4 * hidden]
        w1 = w_a[:, 4 * hidden:8 * hidden]
        bqkv = vec[:, 0 * hidden:3 * hidden]
        bo = vec[:, 3 * hidden:4 * hidden]
        g1 = vec[:, 4 * hidden:5 * hidden]
        be1 = vec[:, 5 * hidden:6 * hidden]
        b1 = vec[:, 6 * hidden:10 * hidden]
        b2 = vec[:, 10 * hidden:11 * hidden]
        g2 = vec[:, 11 * hidden:12 * hidden]
        be2 = vec[:, 12 * hidden:13 * hidden]

        # single fused QKV projection: one (B*T, H) x (H, 3H) matmul
        qkv = jnp.dot(h, wqkv, preferred_element_type=jnp.float32) + bqkv   # (B*T, 3H)

        # lay q/k/v out as (heads*batch, seq, d_k): attention is block-diagonal by construction
        def split_heads(z):                       # z: (B*T, H)
            parts = []
            for hd in range(heads):
                for b in range(batch):
                    parts.append(z[b * seq:(b + 1) * seq, hd * d_k:(hd + 1) * d_k])
            return jnp.stack(parts, axis=0)       # (heads*batch, seq, d_k)

        q_g = split_heads(qkv[:, 0 * hidden:1 * hidden])
        k_g = split_heads(qkv[:, 1 * hidden:2 * hidden])
        v_g = split_heads(qkv[:, 2 * hidden:3 * hidden])

        # scores + (deferred-normalization) softmax + PV, all batched over (heads*batch)
        s = jnp.einsum('gnd,gmd->gnm', q_g, k_g, preferred_element_type=jnp.float32) * scale
        s = s - jnp.max(s, axis=-1, keepdims=True)
        p = jnp.exp(s)
        denom = jnp.sum(p, axis=-1, keepdims=True)                    # (G, SEQ, 1)
        o_g = jnp.einsum('gnm,gmd->gnd', p, v_g, preferred_element_type=jnp.float32)
        o_g = o_g * pl.reciprocal(denom, approx=False)                # exact; off the score tile

        # merge heads back to (B*T, H) and apply a single output projection
        attn_in = jnp.concatenate(
            [jnp.concatenate([o_g[hd * batch + b] for b in range(batch)], axis=0)
             for hd in range(heads)], axis=-1)                        # (B*T, H)
        attn = jnp.dot(attn_in, wo, preferred_element_type=jnp.float32) + bo

        y = layernorm(h + attn, g1, be1)
        ff = jnp.maximum(jnp.dot(y, w1, preferred_element_type=jnp.float32) + b1, 0.0)
        ff = jnp.dot(ff, w2, preferred_element_type=jnp.float32) + b2
        h = layernorm(y + ff, g2, be2)

    # last-token selection BEFORE the output projection; single whole-ref store
    h_last = jnp.concatenate(
        [h[(b + 1) * seq - 1:(b + 1) * seq, :] for b in range(batch)], axis=0)  # (B, H)
    wob = wob_ref[...]                                                 # (H+1, OUT): [W_out; b_out]
    out = jnp.dot(h_last, wob[0:hidden, :], preferred_element_type=jnp.float32) \
        + wob[hidden:hidden + 1, :]
    o_ref[...] = out


# ----------------------------- host-side packing / wrappers -----------------------------
def pack_params(params):
    """Host glue (done once): pack per-layer weights/vectors into a few stacked arrays."""
    w_a_l, w2_l, vec_l = [], [], []
    for (wq, bq, wk, bk, wv, bv, wo, bo, g1, be1, w1, b1, w2, b2, g2, be2) in params["layers"]:
        w_a_l.append(jnp.concatenate([wq, wk, wv, wo, w1], axis=1))       # (H, 8H)
        w2_l.append(w2)                                                   # (4H, H)
        vec_l.append(jnp.concatenate([bq, bk, bv, bo, g1, be1, b1, b2, g2, be2], axis=1))  # (1, 13H)
    # (b_in + pe) folded into one constant (B*T, H) table, precomputed once
    bias_pe = jnp.tile(params["b_in"] + params["pe"][0, :SEQ, :], (B, 1))
    wob = jnp.concatenate([params["w_out"], params["b_out"]], axis=0)     # (H+1, OUT)
    return dict(w_in=params["w_in"], bias_pe=bias_pe,
                w_a=jnp.stack(w_a_l), w2=jnp.stack(w2_l),
                vecs=jnp.stack(vec_l)[:, None, :].reshape(LAYERS, 1, 13 * HIDDEN)
                if jnp.stack(vec_l).ndim == 2 else jnp.stack(vec_l),
                wob=wob)


def model_forward(x, packed):
    # x: (B, input_size, seq_len) -> (B, output_size); ONE fused grid-less pallas_call.
    xt2d = jnp.transpose(x, (0, 2, 1)).reshape(B * SEQ, IN_SIZE)   # glue: x.transpose(1, 2), flatten batch
    kern = functools.partial(fused_transformer_kernel, batch=B, seq=SEQ, hidden=HIDDEN,
                             heads=HEADS, d_k=DK, layers=LAYERS)
    vmem_specs = [pl.BlockSpec(memory_space=pltpu.MemorySpace.VMEM) for _ in range(7)]
    return pl.pallas_call(
        kern,
        out_shape=jax.ShapeDtypeStruct((B, OUT_SIZE), jnp.float32),
        in_specs=vmem_specs,
        out_specs=pl.BlockSpec(memory_space=pltpu.MemorySpace.VMEM),
    )(xt2d, packed["w_in"], packed["bias_pe"], packed["w_a"], packed["w2"],
      packed["vecs"], packed["wob"])


# ----------------------------- params -----------------------------
def init_params(key):
    def lin(k, fan_in, fan_out):
        kw, kb = jax.random.split(k)
        bound = 1.0 / jnp.sqrt(jnp.float32(fan_in))
        w = jax.random.uniform(kw, (fan_in, fan_out), jnp.float32, -bound, bound)
        b = jax.random.uniform(kb, (1, fan_out), jnp.float32, -bound, bound)
        return w, b

    keys = jax.random.split(key, 2 + LAYERS)
    w_in, b_in = lin(keys[0], IN_SIZE, HIDDEN)
    w_out, b_out = lin(keys[1], HIDDEN, OUT_SIZE)

    layers = []
    for l in range(LAYERS):
        lk = jax.random.split(keys[2 + l], 6)
        wq, bq = lin(lk[0], HIDDEN, HIDDEN)
        wk, bk = lin(lk[1], HIDDEN, HIDDEN)
        wv, bv = lin(lk[2], HIDDEN, HIDDEN)
        wo, bo = lin(lk[3], HIDDEN, HIDDEN)
        w1, b1 = lin(lk[4], HIDDEN, 4 * HIDDEN)
        w2, b2 = lin(lk[5], 4 * HIDDEN, HIDDEN)
        g1 = jnp.ones((1, HIDDEN), jnp.float32)
        be1 = jnp.zeros((1, HIDDEN), jnp.float32)
        g2 = jnp.ones((1, HIDDEN), jnp.float32)
        be2 = jnp.zeros((1, HIDDEN), jnp.float32)
        layers.append((wq, bq, wk, bk, wv, bv, wo, bo,
                       g1, be1, w1, b1, w2, b2, g2, be2))

    return {"w_in": w_in, "b_in": b_in, "layers": layers, "w_out": w_out, "b_out": b_out}


# ----------------------------- pure-JAX reference -----------------------------
def reference_forward(x, params):
    def ln(z, g, b):
        mu = jnp.mean(z, axis=-1, keepdims=True)
        var = jnp.mean((z - mu) ** 2, axis=-1, keepdims=True)
        return (z - mu) / jnp.sqrt(var + LN_EPS) * g + b

    h = jnp.transpose(x, (0, 2, 1)) @ params["w_in"] + params["b_in"]
    h = h + params["pe"][:, :SEQ, :]
    for (wq, bq, wk, bk, wv, bv, wo, bo, g1, be1, w1, b1, w2, b2, g2, be2) in params["layers"]:
        q = (h @ wq + bq).reshape(B, SEQ, HEADS, DK).transpose(0, 2, 1, 3)
        k = (h @ wk + bk).reshape(B, SEQ, HEADS, DK).transpose(0, 2, 1, 3)
        v = (h @ wv + bv).reshape(B, SEQ, HEADS, DK).transpose(0, 2, 1, 3)
        s = jnp.einsum("bhqd,bhkd->bhqk", q, k) / jnp.sqrt(jnp.float32(DK))
        p = jax.nn.softmax(s, axis=-1)
        o = jnp.einsum("bhqk,bhkd->bhqd", p, v).transpose(0, 2, 1, 3).reshape(B, SEQ, HIDDEN)
        o = o @ wo + bo
        h = ln(h + o, g1, be1)
        ff = jax.nn.relu(h @ w1 + b1) @ w2 + b2
        h = ln(h + ff, g2, be2)
    return h[:, -1, :] @ params["w_out"] + params["b_out"]


# ----------------------------- main -----------------------------
if __name__ == "__main__":
    key = jax.random.PRNGKey(0)
    kx, kp, kpe = jax.random.split(key, 3)

    pe_buf = make_pe(PE_MAX_LEN, HIDDEN)                       # (1, max_len, hidden)

    # 1) the spec module on its own: PositionalEncoding.forward (dropout = identity, eval)
    x_pe = jax.random.normal(kpe, (B, SEQ, HIDDEN), jnp.float32)
    y_pe = jax.block_until_ready(positional_encoding(x_pe, pe_buf))
    ref_pe = x_pe + pe_buf[:, :SEQ]
    assert y_pe.shape == (B, SEQ, HIDDEN)
    assert jnp.allclose(y_pe, ref_pe, atol=1e-6, rtol=1e-6)

    # 2) fused transformer forward that embeds the positional encoding
    x = jax.random.normal(kx, (B, IN_SIZE, SEQ), jnp.float32)  # (batch, input_size, seq_len)
    params = init_params(kp)
    params["pe"] = pe_buf
    packed = pack_params(params)

    out = jax.block_until_ready(model_forward(x, packed))
    ref = reference_forward(x, params)
    assert out.shape == (B, OUT_SIZE)
    assert jnp.allclose(out, ref, atol=1e-4, rtol=1e-4), (out, ref)

    print("KERNEL_OK")
</pallas_src>

<mosaic_0001>
module attributes {stable_mosaic.version = 11 : i64} {
  func.func @positional_encoding_kernel(%arg0: memref<2x256xf32, #tpu.memory_space<vmem>>, %arg1: memref<1x256xf32, #tpu.memory_space<vmem>>, %arg2: memref<2x256xf32, #tpu.memory_space<vmem>>) attributes {dimension_semantics = [], scalar_prefetch = 0 : i64, scratch_operands = 0 : i64, tpu.core_type = #tpu.core_type<tc>} {
    %c0 = arith.constant 0 : index
    %c0_0 = arith.constant 0 : index
    %0 = vector.load %arg0[%c0, %c0_0] : memref<2x256xf32, #tpu.memory_space<vmem>>, vector<2x256xf32>
    %c0_1 = arith.constant 0 : index
    %c0_2 = arith.constant 0 : index
    %1 = vector.load %arg1[%c0_1, %c0_2] : memref<1x256xf32, #tpu.memory_space<vmem>>, vector<1x256xf32>
    %2 = vector.broadcast %1 : vector<1x256xf32> to vector<2x256xf32>
    %3 = arith.addf %0, %2 : vector<2x256xf32>
    %c0_3 = arith.constant 0 : index
    %c0_4 = arith.constant 0 : index
    %4 = vector.load %arg2[%c0_3, %c0_4] : memref<2x256xf32, #tpu.memory_space<vmem>>, vector<2x256xf32>
    tpu.vector_store %arg2[%c0_3, %c0_4], %3 {strides = array<i32>} : memref<2x256xf32, #tpu.memory_space<vmem>>, vector<2x256xf32>,
    return
  }
}

</mosaic_0001>

<llo_original>
// kernel: tpu_custom_call.1
$region0: #{tpu_custom_call.1}
  #allocation0 [shape = 'u32[]', space=smem, size = 0x4, offset = 0x4, fixed_abs, tag = 'smem constant byte address 0x4 - core index']
  #allocation1 [shape = 'u32[144,128]{1,0:T(1,128)}', space=vmem, size = 0x12000, scoped, tag = 'internal scratch']
  %s0 = inlined_call_operand.hbm [shape: f32[2,256], index: 0, kind: input, shape index: {}]
  %s1 = inlined_call_operand.vmem [shape: f32[1,256], index: 1, kind: input, shape index: {}]
  %s2 = inlined_call_operand.hbm [shape: f32[2,256], index: 2, kind: output, shape index: {}]
  %s3 = sld [smem:[#allocation0]]
  $region22: #{tpu_custom_call.1} parent=0
    _
  %s5 = ssub.s32 1, %s3
  %s6 = scalar_select 0, %s5, %s3
  $region1: #{tpu_custom_call.1} parent=0
    #allocation2 [shape = 'u8[2048]{0}', space=vmem, size = 0x800, scoped, tag = 'input window, operand 0, single buffered']
    #allocation3 [shape = 's32[1]{0}', space=sflag, size = 0x4, scoped, tag = 'scoped memory for tpu_custom_call.1']
    #allocation4 [shape = 's32[1]{0}', space=sflag, size = 0x4, scoped, tag = 'scoped memory for tpu_custom_call.1']
    #allocation5 [shape = 'u8[2048]{0}', space=vmem, size = 0x800, scoped, tag = 'output window, operand 0, single buffered']
    %7 = vsyncpa [#allocation3], 0
    %8 = vsyncpa [#allocation4], 0
    // Predicated region
    $region2: #{tpu_custom_call.1} parent=1 // pred_check
      _
    $region3: #{tpu_custom_call.1} parent=1 // pred_check_branch
      %10 = sbr.rel (0) target = $region5
    $region4: #{tpu_custom_call.1} parent=1 // pred_region
      %s12 = ssub.s32 64, 64
      %13 = vsyncadd [#allocation3], %s12
      %s15 = sshll.u32 [#allocation2], 4
      %s16 = int_to_ptr.vmem [resolvable:$true] %s15
      %18 = dma.hbm_to_vmem [thread:$0]  %s0, 64, %s16, [#allocation3]
    $region5: #{tpu_custom_call.1} parent=1 // pred_fallthru
      _
    // Predicated region
    $region6: #{tpu_custom_call.1} parent=1 // pred_check
      _
    $region7: #{tpu_custom_call.1} parent=1 // pred_check_branch
      %20 = sbr.rel (0) target = $region9
    $region8: #{tpu_custom_call.1} parent=1 // pred_region
      _
    $region9: #{tpu_custom_call.1} parent=1 // pred_fallthru
      _
    // Predicated region
    $region10: #{tpu_custom_call.1} parent=1 // pred_check
      _
    $region11: #{tpu_custom_call.1} parent=1 // pred_check_branch
      %22 = sbr.rel (0) target = $region13
    $region12: #{tpu_custom_call.1} parent=1 // pred_region
      %23 = dma.done [#allocation3], 64
    $region13: #{tpu_custom_call.1} parent=1 // pred_fallthru
      _
    %v24 = vld [vmem:[#allocation2] sm:$0xf]
    %v25 = vld [vmem:[%s1] sm:$0x3]
    %v27 = vlaneseq
    %v28 = vshrl.u32 %v27, 7
    %v29 = vsub.s32 0, %v28
    %v30 = vrot.slane %v25, %v29
    %v31 = vlaneseq
    %v32 = vshrl.u32 %v31, 7
    %v33 = vsub.s32 1, %v32
    %v34 = vrot.slane %v25, %v33
    %v35 = vcombine.low %v30, %v34
    %v37 = vunpack.c.l.s4 1983009808
    %v38 = vunpack.c.0.s8 %v37
    %v39 = vlaneseq
    %v40 = vshrl.u32 %v39, 7
    %v41 = vsub.s32 %v38, %v40
    %v42 = vrot.slane %v35, %v41
    %v44 = vadd.f32 %v24, %v42
    %45 = vst [vmem:[#allocation5] sm:$0xf] %v44
    // Predicated region
    $region14: #{tpu_custom_call.1} parent=1 // pred_check
      _
    $region15: #{tpu_custom_call.1} parent=1 // pred_check_branch
      %47 = sbr.rel (0) target = $region17
    $region16: #{tpu_custom_call.1} parent=1 // pred_region
      %s49 = ssub.s32 64, 64
      %50 = vsyncadd [#allocation4], %s49
      %s52 = sshll.u32 [#allocation5], 4
      %s53 = int_to_ptr.vmem [resolvable:$true] %s52
      %55 = dma.vmem_to_hbm [thread:$0]  %s53, 64, %s2, [#allocation4]
    $region17: #{tpu_custom_call.1} parent=1 // pred_fallthru
      _
    // Predicated region
    $region18: #{tpu_custom_call.1} parent=1 // pred_check
      _
    $region19: #{tpu_custom_call.1} parent=1 // pred_check_branch
      %57 = sbr.rel (0) target = $region21
    $region20: #{tpu_custom_call.1} parent=1 // pred_region
      %58 = dma.done [#allocation4], 64
    $region21: #{tpu_custom_call.1} parent=1 // pred_fallthru
      _
    %59 = vsyncpa [#allocation3], 1
    %60 = vsyncpa [#allocation4], 1

</llo_original>
